<compile_context>
chip_gen: v5e
topology: v5e:2x2
jax: 0.10.0
libtpu: 0.0.40
codegen_flags: <defaults>
</compile_context>

<pallas_src>
import math

import jax
import jax.numpy as jnp
from jax.experimental import pallas as pl
from jax.experimental.pallas import tpu as pltpu


def _make_focal_loss_kernel(gamma, TM, W, numel, tiles_per_core, total_grid_tiles):
    g = float(gamma)
    use_int_pow = (g == int(g)) and (0 <= int(g) <= 16)
    tile_elems = TM * W
    full_tiles = numel // tile_elems                 # tiles that are 100% valid
    tail_valid = numel - full_tiles * tile_elems     # valid elems in tile `full_tiles`
    exact_cover = (total_grid_tiles * tile_elems == numel)

    def kernel(preds_ref, labels_ref, alpha_ref, out_ref):
        c = pl.program_id(0)   # core split (parallel)
        t = pl.program_id(1)   # row-tile within core (arbitrary / reduction)

        @pl.when(t == 0)
        def _init():
            out_ref[...] = jnp.zeros_like(out_ref)

        def accumulate(mask_tail):
            x = preds_ref[...].astype(jnp.float32)       # (TM, W)
            y = labels_ref[...].astype(jnp.float32)      # (TM, W)
            alpha = alpha_ref[...].astype(jnp.float32)   # (1, W) broadcasts over rows

            # Numerically stable BCE-with-logits (torch formulation):
            #   max(x, 0) - x*y + log(1 + exp(-|x|))
            bce = jnp.maximum(x, 0.0) - x * y + jnp.log1p(jnp.exp(-jnp.abs(x)))
            pt = jnp.exp(-bce)
            omp = 1.0 - pt

            if use_int_pow:
                gi = int(g)
                wpow = jnp.ones_like(omp) if gi == 0 else omp
                for _ in range(max(gi - 1, 0)):          # gamma=2 -> one square
                    wpow = wpow * omp
            else:
                wpow = omp ** g                          # non-integer gamma fallback

            loss = alpha * wpow * bce

            if mask_tail:
                # Only the single straddling tile pays for this.  Local index
                # within the tile vs a static remaining count -> no overflow.
                local = (jax.lax.broadcasted_iota(jnp.int32, (TM, W), 0) * W
                         + jax.lax.broadcasted_iota(jnp.int32, (TM, W), 1))
                loss = jnp.where(local < tail_valid, loss, 0.0)

            # VPU-only partial reduction into the resident output block.
            # (TM, W) -> (TM//8, 8, W) is a free leading-axis split.
            out_ref[...] += loss.reshape(TM // 8, 8, W).sum(axis=0)

        if exact_cover:
            # Tiles cover numel exactly: no mask, no branches in steady state.
            accumulate(False)
        else:
            g_idx = c * tiles_per_core + t   # global tile index (small, no overflow)

            @pl.when(g_idx < full_tiles)
            def _steady():
                accumulate(False)

            if tail_valid > 0:
                @pl.when(g_idx == full_tiles)
                def _tail():
                    accumulate(True)
            # Tiles with g_idx beyond the data contribute nothing (skipped).

    return kernel


def focal_loss_pallas(preds, labels, alpha_vec, gamma=2.0, size_average=True,
                      num_cores=2, vmem_budget_bytes=32 * 1024 * 1024):
    """preds, labels: (..., C) arrays (any float/int dtype). alpha_vec: (C,)."""
    preds = jnp.asarray(preds)      # pass caller dtype through; kernel upcasts to f32
    labels = jnp.asarray(labels)
    assert preds.shape == labels.shape
    C = preds.shape[-1]
    numel = math.prod(preds.shape)

    # Lane-dense width: lcm(C, 128).  The (C,) alpha pattern repeats identically
    # on every flattened row, so one resident (1, W) alpha row suffices.
    W = (C * 128) // math.gcd(C, 128)
    alpha_row = jnp.tile(jnp.asarray(alpha_vec, jnp.float32).reshape(1, C),
                         (1, W // C))                                  # (1, W)

    rows = -(-numel // W)
    pad = rows * W - numel
    p_flat = preds.reshape(-1)
    l_flat = labels.reshape(-1)
    if pad:
        # TODO(synk): for numel % W != 0 this jnp.pad still materializes one
        # copy of each input; a manual-DMA (pl.ANY) variant could avoid it.
        p_flat = jnp.pad(p_flat, (0, pad))
        l_flat = jnp.pad(l_flat, (0, pad))
    p2 = p_flat.reshape(rows, W)    # numel % W == 0  ->  free reshape, zero copies
    l2 = l_flat.reshape(rows, W)

    # Byte-budgeted row tile: 2 inputs x 2 pipeline buffers of (TM, W).
    itemsize_sum = p2.dtype.itemsize + l2.dtype.itemsize
    bytes_per_row = 2 * W * itemsize_sum
    TM = max(8, (int(vmem_budget_bytes) // bytes_per_row) // 8 * 8)
    TM = min(TM, ((rows + 7) // 8) * 8)                                # mult of 8

    num_tiles = -(-rows // TM)
    ncores = max(1, min(int(num_cores), num_tiles))
    tiles_per_core = -(-num_tiles // ncores)
    total_grid_tiles = ncores * tiles_per_core

    kernel = _make_focal_loss_kernel(gamma, TM, W, numel, tiles_per_core,
                                     total_grid_tiles)

    # Clamp the row-block index so over-hanging grid steps (skipped in-kernel)
    # never ask for a block start beyond the array.
    def _in_map(c, t):
        return (jnp.minimum(c * tiles_per_core + t, num_tiles - 1), 0)

    pipeline_bytes = 2 * TM * W * itemsize_sum
    vmem_limit = int(min(max(pipeline_bytes + (2 << 20), 16 << 20), 48 << 20))

    partials = pl.pallas_call(
        kernel,
        out_shape=jax.ShapeDtypeStruct((ncores * 8, W), jnp.float32),
        grid_spec=pltpu.PrefetchScalarGridSpec(
            num_scalar_prefetch=0,
            grid=(ncores, tiles_per_core),
            in_specs=[
                pl.BlockSpec((TM, W), _in_map),
                pl.BlockSpec((TM, W), _in_map),
                pl.BlockSpec((1, W), lambda c, t: (0, 0)),   # alpha: resident
            ],
            out_specs=pl.BlockSpec((8, W), lambda c, t: (c, 0)),  # per-core partials
        ),
        compiler_params=pltpu.CompilerParams(
            dimension_semantics=("parallel", "arbitrary"),
            vmem_limit_bytes=vmem_limit,
        ),
    )(p2, l2, alpha_row)

    total = jnp.sum(partials, dtype=jnp.float32)   # tiny (ncores*8, W) reduce in XLA
    if size_average:
        total = total / jnp.float32(numel)
    return total


def focal_loss_reference(preds, labels, alpha_vec, gamma=2.0, size_average=True):
    x = jnp.asarray(preds, jnp.float32)
    y = jnp.asarray(labels, jnp.float32)
    bce = jnp.maximum(x, 0.0) - x * y + jnp.log1p(jnp.exp(-jnp.abs(x)))
    pt = jnp.exp(-bce)
    loss = jnp.asarray(alpha_vec, jnp.float32).reshape(1, -1) * (1.0 - pt) ** gamma * bce
    return jnp.mean(loss) if size_average else jnp.sum(loss)


if __name__ == "__main__":
    # Deterministic module parameters (matches __init__ with alpha=0.25, num_classes=2)
    alpha_scalar = 0.25
    gamma = 2.0
    num_classes = 2
    alpha_vec = jnp.zeros((num_classes,), dtype=jnp.float32)
    alpha_vec = alpha_vec.at[0].add(alpha_scalar)
    alpha_vec = alpha_vec.at[1:].add(1.0 - alpha_scalar)

    key = jax.random.PRNGKey(0)
    k = jax.random.split(key, 8)

    # Test 1: small (8, 2) -- single tile, heavy tail masking, num_cores clamps to 1.
    preds1 = jax.random.normal(k[0], (8, num_classes), dtype=jnp.float32)
    labels1 = jax.random.bernoulli(k[1], 0.5, (8, num_classes)).astype(jnp.float32)
    out1 = jax.block_until_ready(
        focal_loss_pallas(preds1, labels1, alpha_vec, gamma=gamma, size_average=True))
    ref1 = focal_loss_reference(preds1, labels1, alpha_vec, gamma=gamma, size_average=True)
    assert jnp.allclose(out1, ref1, rtol=1e-5, atol=1e-6), (out1, ref1)

    # Test 2: (4096, 2) -- numel % W == 0 (zero-copy reshape, no mask anywhere),
    # tiny VMEM budget forces TM=8 so the 4 row-tiles split across the 2-way
    # parallel axis (2 cores x 2 tiles) with per-core partial sums.
    preds2 = jax.random.normal(k[2], (4096, num_classes), dtype=jnp.float32)
    labels2 = jax.random.bernoulli(k[3], 0.5, (4096, num_classes)).astype(jnp.float32)
    out2 = jax.block_until_ready(
        focal_loss_pallas(preds2, labels2, alpha_vec, gamma=gamma, size_average=True,
                          vmem_budget_bytes=8 * 2 * 256 * 8))
    ref2 = focal_loss_reference(preds2, labels2, alpha_vec, gamma=gamma, size_average=True)
    assert jnp.allclose(out2, ref2, rtol=1e-5, atol=1e-6), (out2, ref2)

    # Test 3: (600, 2) -- non-divisible size (tail pad + last-tile mask), sum reduction,
    # bf16 preds passed straight through (kernel upcasts in VMEM).
    preds3 = jax.random.normal(k[4], (600, num_classes), dtype=jnp.float32)
    labels3 = jax.random.bernoulli(k[5], 0.5, (600, num_classes)).astype(jnp.float32)
    preds3_bf16 = preds3.astype(jnp.bfloat16)
    out3 = jax.block_until_ready(
        focal_loss_pallas(preds3_bf16, labels3, alpha_vec, gamma=gamma, size_average=False))
    ref3 = focal_loss_reference(preds3_bf16.astype(jnp.float32), labels3, alpha_vec,
                                gamma=gamma, size_average=False)
    assert jnp.allclose(out3, ref3, rtol=1e-5, atol=1e-5), (out3, ref3)

    print("KERNEL_OK")
</pallas_src>

<mosaic_0001>
module attributes {stable_mosaic.version = 11 : i64} {
  func.func @kernel(%arg0: i32, %arg1: i32, %arg2: memref<8x128xf32, #tpu.memory_space<vmem>>, %arg3: memref<8x128xf32, #tpu.memory_space<vmem>>, %arg4: memref<1x128xf32, #tpu.memory_space<vmem>>, %arg5: memref<8x128xf32, #tpu.memory_space<vmem>>) attributes {dimension_semantics = [#tpu.dimension_semantics<parallel>, #tpu.dimension_semantics<arbitrary>], iteration_bounds = array<i64: 1, 1>, scalar_prefetch = 0 : i64, scratch_operands = 0 : i64, tpu.core_type = #tpu.core_type<tc>, window_params = [{transform_indices = @transform_0, window_bounds = array<i64: 8, 128>}, {transform_indices = @transform_1, window_bounds = array<i64: 8, 128>}, {pipeline_mode = #tpu.pipeline_mode<synchronous>, transform_indices = @transform_2, window_bounds = array<i64: 1, 128>}, {transform_indices = @transform_3, window_bounds = array<i64: 8, 128>}]} {
    %c0_i32 = arith.constant 0 : i32
    %0 = arith.cmpi eq, %arg1, %c0_i32 : i32
    %1 = arith.extui %0 : i1 to i32
    %c0_i32_0 = arith.constant 0 : i32
    %2 = arith.cmpi ne, %1, %c0_i32_0 : i32
    scf.if %2 {
      %cst = arith.constant 0.000000e+00 : f32
      %11 = vector.broadcast %cst : f32 to vector<8x128xf32>
      %c0 = arith.constant 0 : index
      %c0_5 = arith.constant 0 : index
      %12 = vector.load %arg5[%c0, %c0_5] : memref<8x128xf32, #tpu.memory_space<vmem>>, vector<8x128xf32>
      tpu.vector_store %arg5[%c0, %c0_5], %11 {strides = array<i32>} : memref<8x128xf32, #tpu.memory_space<vmem>>, vector<8x128xf32>,
    } else {
    }
    %c1_i32 = arith.constant 1 : i32
    %3 = arith.muli %arg0, %c1_i32 : i32
    %4 = arith.addi %3, %arg1 : i32
    %c0_i32_1 = arith.constant 0 : i32
    %5 = arith.cmpi slt, %4, %c0_i32_1 : i32
    %6 = arith.extui %5 : i1 to i32
    %c0_i32_2 = arith.constant 0 : i32
    %7 = arith.cmpi ne, %6, %c0_i32_2 : i32
    scf.if %7 {
      %c0 = arith.constant 0 : index
      %c0_5 = arith.constant 0 : index
      %11 = vector.load %arg2[%c0, %c0_5] : memref<8x128xf32, #tpu.memory_space<vmem>>, vector<8x128xf32>
      %c0_6 = arith.constant 0 : index
      %c0_7 = arith.constant 0 : index
      %12 = vector.load %arg3[%c0_6, %c0_7] : memref<8x128xf32, #tpu.memory_space<vmem>>, vector<8x128xf32>
      %c0_8 = arith.constant 0 : index
      %c0_9 = arith.constant 0 : index
      %13 = vector.load %arg4[%c0_8, %c0_9] : memref<1x128xf32, #tpu.memory_space<vmem>>, vector<1x128xf32>
      %cst = arith.constant 0.000000e+00 : f32
      %14 = vector.broadcast %cst : f32 to vector<8x128xf32>
      %15 = arith.maximumf %11, %14 : vector<8x128xf32>
      %16 = arith.mulf %11, %12 : vector<8x128xf32>
      %17 = arith.subf %15, %16 : vector<8x128xf32>
      %18 = math.absf %11 : vector<8x128xf32>
      %cst_10 = arith.constant 0.000000e+00 : f32
      %19 = vector.broadcast %cst_10 : f32 to vector<8x128xf32>
      %20 = arith.subf %19, %18 : vector<8x128xf32>
      %21 = math.exp %20 : vector<8x128xf32>
      %22 = math.log1p %21 : vector<8x128xf32>
      %23 = arith.addf %17, %22 : vector<8x128xf32>
      %cst_11 = arith.constant 0.000000e+00 : f32
      %24 = vector.broadcast %cst_11 : f32 to vector<8x128xf32>
      %25 = arith.subf %24, %23 : vector<8x128xf32>
      %26 = math.exp %25 : vector<8x128xf32>
      %cst_12 = arith.constant 1.000000e+00 : f32
      %27 = vector.broadcast %cst_12 : f32 to vector<8x128xf32>
      %28 = arith.subf %27, %26 : vector<8x128xf32>
      %29 = arith.mulf %28, %28 : vector<8x128xf32>
      %30 = vector.broadcast %13 : vector<1x128xf32> to vector<8x128xf32>
      %31 = arith.mulf %30, %29 : vector<8x128xf32>
      %32 = arith.mulf %31, %23 : vector<8x128xf32>
      %c0_13 = arith.constant 0 : index
      %c0_14 = arith.constant 0 : index
      %33 = vector.load %arg5[%c0_13, %c0_14] : memref<8x128xf32, #tpu.memory_space<vmem>>, vector<8x128xf32>
      %34 = vector.shape_cast %32 : vector<8x128xf32> to vector<1x8x128xf32>
      %cst_15 = arith.constant dense<0.000000e+00> : vector<8x128xf32>
      %35 = vector.multi_reduction <add>, %34, %cst_15 [0] : vector<1x8x128xf32> to vector<8x128xf32>
      %36 = arith.addf %33, %35 : vector<8x128xf32>
      %c0_16 = arith.constant 0 : index
      %c0_17 = arith.constant 0 : index
      %37 = vector.load %arg5[%c0_16, %c0_17] : memref<8x128xf32, #tpu.memory_space<vmem>>, vector<8x128xf32>
      tpu.vector_store %arg5[%c0_16, %c0_17], %36 {strides = array<i32>} : memref<8x128xf32, #tpu.memory_space<vmem>>, vector<8x128xf32>,
    } else {
    }
    %c0_i32_3 = arith.constant 0 : i32
    %8 = arith.cmpi eq, %4, %c0_i32_3 : i32
    %9 = arith.extui %8 : i1 to i32
    %c0_i32_4 = arith.constant 0 : i32
    %10 = arith.cmpi ne, %9, %c0_i32_4 : i32
    scf.if %10 {
      %c0 = arith.constant 0 : index
      %c0_5 = arith.constant 0 : index
      %11 = vector.load %arg2[%c0, %c0_5] : memref<8x128xf32, #tpu.memory_space<vmem>>, vector<8x128xf32>
      %c0_6 = arith.constant 0 : index
      %c0_7 = arith.constant 0 : index
      %12 = vector.load %arg3[%c0_6, %c0_7] : memref<8x128xf32, #tpu.memory_space<vmem>>, vector<8x128xf32>
      %c0_8 = arith.constant 0 : index
      %c0_9 = arith.constant 0 : index
      %13 = vector.load %arg4[%c0_8, %c0_9] : memref<1x128xf32, #tpu.memory_space<vmem>>, vector<1x128xf32>
      %cst = arith.constant 0.000000e+00 : f32
      %14 = vector.broadcast %cst : f32 to vector<8x128xf32>
      %15 = arith.maximumf %11, %14 : vector<8x128xf32>
      %16 = arith.mulf %11, %12 : vector<8x128xf32>
      %17 = arith.subf %15, %16 : vector<8x128xf32>
      %18 = math.absf %11 : vector<8x128xf32>
      %cst_10 = arith.constant 0.000000e+00 : f32
      %19 = vector.broadcast %cst_10 : f32 to vector<8x128xf32>
      %20 = arith.subf %19, %18 : vector<8x128xf32>
      %21 = math.exp %20 : vector<8x128xf32>
      %22 = math.log1p %21 : vector<8x128xf32>
      %23 = arith.addf %17, %22 : vector<8x128xf32>
      %cst_11 = arith.constant 0.000000e+00 : f32
      %24 = vector.broadcast %cst_11 : f32 to vector<8x128xf32>
      %25 = arith.subf %24, %23 : vector<8x128xf32>
      %26 = math.exp %25 : vector<8x128xf32>
      %cst_12 = arith.constant 1.000000e+00 : f32
      %27 = vector.broadcast %cst_12 : f32 to vector<8x128xf32>
      %28 = arith.subf %27, %26 : vector<8x128xf32>
      %29 = arith.mulf %28, %28 : vector<8x128xf32>
      %30 = vector.broadcast %13 : vector<1x128xf32> to vector<8x128xf32>
      %31 = arith.mulf %30, %29 : vector<8x128xf32>
      %32 = arith.mulf %31, %23 : vector<8x128xf32>
      %33 = tpu.iota {dimensions = array<i32: 0>} : vector<8x128xi32>
      %c128_i32 = arith.constant 128 : i32
      %34 = vector.broadcast %c128_i32 : i32 to vector<8x128xi32>
      %35 = arith.muli %33, %34 : vector<8x128xi32>
      %36 = tpu.iota {dimensions = array<i32: 1>} : vector<8x128xi32>
      %37 = arith.addi %35, %36 : vector<8x128xi32>
      %c16_i32 = arith.constant 16 : i32
      %38 = vector.broadcast %c16_i32 : i32 to vector<8x128xi32>
      %39 = arith.cmpi slt, %37, %38 : vector<8x128xi32>
      %cst_13 = arith.constant 0.000000e+00 : f32
      %40 = vector.broadcast %cst_13 : f32 to vector<8x128xf32>
      %41 = arith.select %39, %32, %40 : vector<8x128xi1>, vector<8x128xf32>
      %c0_14 = arith.constant 0 : index
      %c0_15 = arith.constant 0 : index
      %42 = vector.load %arg5[%c0_14, %c0_15] : memref<8x128xf32, #tpu.memory_space<vmem>>, vector<8x128xf32>
      %43 = vector.shape_cast %41 : vector<8x128xf32> to vector<1x8x128xf32>
      %cst_16 = arith.constant dense<0.000000e+00> : vector<8x128xf32>
      %44 = vector.multi_reduction <add>, %43, %cst_16 [0] : vector<1x8x128xf32> to vector<8x128xf32>
      %45 = arith.addf %42, %44 : vector<8x128xf32>
      %c0_17 = arith.constant 0 : index
      %c0_18 = arith.constant 0 : index
      %46 = vector.load %arg5[%c0_17, %c0_18] : memref<8x128xf32, #tpu.memory_space<vmem>>, vector<8x128xf32>
      tpu.vector_store %arg5[%c0_17, %c0_18], %45 {strides = array<i32>} : memref<8x128xf32, #tpu.memory_space<vmem>>, vector<8x128xf32>,
    } else {
    }
    return
  }
  func.func @transform_0(%arg0: i32, %arg1: i32) -> (i32, i32) {
    %c1_i32 = arith.constant 1 : i32
    %0 = arith.muli %arg0, %c1_i32 : i32
    %1 = arith.addi %0, %arg1 : i32
    %c0_i32 = arith.constant 0 : i32
    %2 = arith.minsi %1, %c0_i32 : i32
    %c0_i32_0 = arith.constant 0 : i32
    %c0_i32_1 = arith.constant 0 : i32
    return %2, %c0_i32_0 : i32, i32
  }
  func.func @transform_1(%arg0: i32, %arg1: i32) -> (i32, i32) {
    %c1_i32 = arith.constant 1 : i32
    %0 = arith.muli %arg0, %c1_i32 : i32
    %1 = arith.addi %0, %arg1 : i32
    %c0_i32 = arith.constant 0 : i32
    %2 = arith.minsi %1, %c0_i32 : i32
    %c0_i32_0 = arith.constant 0 : i32
    %c0_i32_1 = arith.constant 0 : i32
    return %2, %c0_i32_0 : i32, i32
  }
  func.func @transform_2(%arg0: i32, %arg1: i32) -> (i32, i32) {
    %c0_i32 = arith.constant 0 : i32
    %c0_i32_0 = arith.constant 0 : i32
    %c0_i32_1 = arith.constant 0 : i32
    return %c0_i32, %c0_i32_0 : i32, i32
  }
  func.func @transform_3(%arg0: i32, %arg1: i32) -> (i32, i32) {
    %c0_i32 = arith.constant 0 : i32
    %c0_i32_0 = arith.constant 0 : i32
    return %arg0, %c0_i32 : i32, i32
  }
}

</mosaic_0001>

<llo_original>
// kernel: tpu_custom_call.1
$region0: #{tpu_custom_call.1}
  #allocation0 [shape = 'u32[]', space=smem, size = 0x4, offset = 0x4, fixed_abs, tag = 'smem constant byte address 0x4 - core index']
  #allocation1 [shape = 'u32[72,128]{1,0:T(1,128)}', space=vmem, size = 0x9000, scoped, tag = 'internal scratch']
  %s0 = inlined_call_operand.hbm [shape: f32[1,128], index: 0, kind: input, shape index: {}]
  %s1 = inlined_call_operand.hbm [shape: f32[1,128], index: 1, kind: input, shape index: {}]
  %s2 = inlined_call_operand.vmem [shape: f32[1,128], index: 2, kind: input, shape index: {}]
  %s3 = inlined_call_operand.hbm [shape: f32[8,128], index: 3, kind: output, shape index: {}]
  %s4 = sld [smem:[#allocation0]]
  $region42: #{tpu_custom_call.1} parent=0
    _
  %s6 = ssub.s32 1, %s4
  %s7 = scalar_select 0, %s6, %s4
  $region1: #{tpu_custom_call.1} parent=0
    #allocation2 [shape = 'u8[4096]{0}', space=vmem, size = 0x1000, scoped, tag = 'input window, operand 0, single buffered']
    #allocation3 [shape = 's32[1]{0}', space=sflag, size = 0x4, scoped, tag = 'scoped memory for tpu_custom_call.1']
    #allocation4 [shape = 's32[1]{0}', space=sflag, size = 0x4, scoped, tag = 'scoped memory for tpu_custom_call.1']
    #allocation5 [shape = 'u8[4096]{0}', space=vmem, size = 0x1000, scoped, tag = 'input window, operand 1, single buffered']
    #allocation6 [shape = 's32[1]{0}', space=sflag, size = 0x4, scoped, tag = 'scoped memory for tpu_custom_call.1']
    #allocation7 [shape = 'u8[4096]{0}', space=vmem, size = 0x1000, scoped, tag = 'output window, operand 0, single buffered']
    %8 = vsyncpa [#allocation3], 0
    %9 = vsyncpa [#allocation6], 0
    %10 = vsyncpa [#allocation4], 0
    // Predicated region
    $region2: #{tpu_custom_call.1} parent=1 // pred_check
      _
    $region3: #{tpu_custom_call.1} parent=1 // pred_check_branch
      %12 = sbr.rel (0) target = $region5
    $region4: #{tpu_custom_call.1} parent=1 // pred_region
      %s13 = sadd.s32 0, 0
      %p14 = scmp.lt.s32.totalorder %s13, 0
      %s15 = scalar_select %p14, %s13, 0
      %s16 = smul.u32 8, %s15
      %s17 = ssub.s32 1, %s16
      %s18 = ssub.s32 8, %s17
      %s19 = sshll.u32 %s18, 4
      %20 = vsyncadd [#allocation3], %s19
      %p21 = scmp.ne.s32.totalorder 0, %s17
      %s22 = scalar_lea.hbm %s0, %s16
      %s23 = sshll.u32 %s22, 4
      %s24 = int_to_ptr.hbm [resolvable:$true] %s23
      %s25 = sshll.u32 [#allocation2], 4
      %s26 = int_to_ptr.vmem [resolvable:$true] %s25
      %s27 = sshll.u32 %s17, 4
      %31 = dma.hbm_to_vmem [thread:$0]  (%p21), %s24, %s27, %s26, [#allocation3], 16, 16, 1
    $region5: #{tpu_custom_call.1} parent=1 // pred_fallthru
      _
    // Predicated region
    $region6: #{tpu_custom_call.1} parent=1 // pred_check
      _
    $region7: #{tpu_custom_call.1} parent=1 // pred_check_branch
      %33 = sbr.rel (0) target = $region9
    $region8: #{tpu_custom_call.1} parent=1 // pred_region
      %s34 = sadd.s32 0, 0
      %p35 = scmp.lt.s32.totalorder %s34, 0
      %s36 = scalar_select %p35, %s34, 0
      %s37 = smul.u32 8, %s36
      %s38 = ssub.s32 1, %s37
      %s39 = ssub.s32 8, %s38
      %s40 = sshll.u32 %s39, 4
      %41 = vsyncadd [#allocation6], %s40
      %p42 = scmp.ne.s32.totalorder 0, %s38
      %s43 = scalar_lea.hbm %s1, %s37
      %s44 = sshll.u32 %s43, 4
      %s45 = int_to_ptr.hbm [resolvable:$true] %s44
      %s46 = sshll.u32 [#allocation5], 4
      %s47 = int_to_ptr.vmem [resolvable:$true] %s46
      %s48 = sshll.u32 %s38, 4
      %52 = dma.hbm_to_vmem [thread:$0]  (%p42), %s45, %s48, %s47, [#allocation6], 16, 16, 1
    $region9: #{tpu_custom_call.1} parent=1 // pred_fallthru
      _
    // Predicated region
    $region10: #{tpu_custom_call.1} parent=1 // pred_check
      _
    $region11: #{tpu_custom_call.1} parent=1 // pred_check_branch
      %54 = sbr.rel (0) target = $region13
    $region12: #{tpu_custom_call.1} parent=1 // pred_region
      _
    $region13: #{tpu_custom_call.1} parent=1 // pred_fallthru
      _
    // Predicated region
    $region14: #{tpu_custom_call.1} parent=1 // pred_check
      _
    $region15: #{tpu_custom_call.1} parent=1 // pred_check_branch
      %56 = sbr.rel (0) target = $region17
    $region16: #{tpu_custom_call.1} parent=1 // pred_region
      %58 = dma.done [#allocation3], 128
    $region17: #{tpu_custom_call.1} parent=1 // pred_fallthru
      _
    // Predicated region
    $region18: #{tpu_custom_call.1} parent=1 // pred_check
      _
    $region19: #{tpu_custom_call.1} parent=1 // pred_check_branch
      %60 = sbr.rel (0) target = $region21
    $region20: #{tpu_custom_call.1} parent=1 // pred_region
      %62 = dma.done [#allocation6], 128
    $region21: #{tpu_custom_call.1} parent=1 // pred_fallthru
      _
    %s63 = sadd.s32 0, 0
    %p64 = scmp.lt.s32.totalorder %s63, 0
    %s65 = scalar_select %p64, %s63, 0
    %s66 = smul.u32 8, %s65
    %s67 = ssub.s32 1, %s66
    %s68 = sadd.s32 0, 0
    %p69 = scmp.lt.s32.totalorder %s68, 0
    %s70 = scalar_select %p69, %s68, 0
    %s71 = smul.u32 8, %s70
    %s72 = ssub.s32 1, %s71
    %p73 = scmp.eq.s32.totalorder 0, 0
    // Predicated region
    $region22: #{tpu_custom_call.1} parent=1 // pred_check
      %p74 = pneg %p73
    $region23: #{tpu_custom_call.1} parent=1 // pred_check_branch
      %76 = sbr.rel (%p74) target = $region25
    $region24: #{tpu_custom_call.1} parent=1 // pred_region
      %77 = vst [vmem:[#allocation7] sm:$0xff] 0.0
    $region25: #{tpu_custom_call.1} parent=1 // pred_fallthru
      _
    %s78 = sadd.s32 0, 0
    %p79 = scmp.lt.s32.totalorder %s78, 0
    // Predicated region
    $region26: #{tpu_custom_call.1} parent=1 // pred_check
      %p80 = pneg %p79
    $region27: #{tpu_custom_call.1} parent=1 // pred_check_branch
      %82 = sbr.rel (%p80) target = $region29
    $region28: #{tpu_custom_call.1} parent=1 // pred_region
      %v83 = vld [vmem:[#allocation2] sm:$0xff]
      %v84 = vld [vmem:[#allocation5] sm:$0xff]
      %v85 = vld [vmem:[%s2] sm:$0x1]
      %v86 = vmax.f32 %v83, 0.0
      %v87 = vmul.f32 %v83, %v84
      %v88 = vsub.f32 %v86, %v87
      %v89 = vand.u32 2147483647, %v83
      %v90 = vsub.f32 0.0, %v89
      %v91 = vmul.f32 %v90, 1.442695
      %v92 = vpow.pop %v91
      %v93 = vadd.f32 %v92, 1.0
      %v94 = vlog2.pop %v93
      %v95 = vmul.f32 %v94, 0.6931472
      %v96 = vmul.f32 -0.5, %v92
      %v97 = vadd.f32 %v96, 1.0
      %v98 = vmul.f32 %v97, %v92
      %v99 = vand.u32 2147483647, %v92
      %vm100 = vcmp.lt.f32.partialorder %v99, 0.0004427343
      %v101 = vsel %vm100, %v98, %v95
      %v102 = vadd.f32 %v88, %v101
      %v103 = vsub.f32 0.0, %v102
      %v104 = vmul.f32 %v103, 1.442695
      %v105 = vpow.pop %v104
      %v106 = vsub.f32 1.0, %v105
      %v107 = vmul.f32 %v106, %v106
      %v109 = vperm.slane %v85, 0
      %v111 = vmul.f32 %v109, %v107
      %v112 = vmul.f32 %v111, %v102
      %v113 = vld [vmem:[#allocation7] sm:$0xff]
      %v114 = vadd.f32 %v112, 0.0
      %v115 = vadd.f32 %v113, %v114
      %116 = vst [vmem:[#allocation7] sm:$0xff] %v115
    $region29: #{tpu_custom_call.1} parent=1 // pred_fallthru
      _
    %p117 = scmp.eq.s32.totalorder %s78, 0
    // Predicated region
    $region30: #{tpu_custom_call.1} parent=1 // pred_check
      %p118 = pneg %p117
    $region31: #{tpu_custom_call.1} parent=1 // pred_check_branch
      %120 = sbr.rel (%p118) target = $region33
    $region32: #{tpu_custom_call.1} parent=1 // pred_region
      %v121 = vld [vmem:[#allocation2] sm:$0xff]
      %v122 = vld [vmem:[#allocation5] sm:$0xff]
      %v123 = vld [vmem:[%s2] sm:$0x1]
      %v124 = vmax.f32 %v121, 0.0
      %v125 = vmul.f32 %v121, %v122
      %v126 = vsub.f32 %v124, %v125
      %v127 = vand.u32 2147483647, %v121
      %v128 = vsub.f32 0.0, %v127
      %v129 = vmul.f32 %v128, 1.442695
      %v130 = vpow.pop %v129
      %v131 = vadd.f32 %v130, 1.0
      %v132 = vlog2.pop %v131
      %v133 = vmul.f32 %v132, 0.6931472
      %v134 = vmul.f32 -0.5, %v130
      %v135 = vadd.f32 %v134, 1.0
      %v136 = vmul.f32 %v135, %v130
      %v137 = vand.u32 2147483647, %v130
      %vm138 = vcmp.lt.f32.partialorder %v137, 0.0004427343
      %v139 = vsel %vm138, %v136, %v133
      %v140 = vadd.f32 %v126, %v139
      %v141 = vsub.f32 0.0, %v140
      %v142 = vmul.f32 %v141, 1.442695
      %v143 = vpow.pop %v142
      %v144 = vsub.f32 1.0, %v143
      %v145 = vmul.f32 %v144, %v144
      %v147 = vperm.slane %v123, 0
      %v149 = vmul.f32 %v147, %v145
      %v150 = vmul.f32 %v149, %v140
      %v151 = vlaneseq
      %v152 = vshrl.u32 %v151, 7
      %v153 = vmul.u32 %v152, 128
      %v154 = vlaneseq
      %v155 = vand.u32 %v154, 127
      %v156 = vadd.s32 %v153, %v155
      %vm157 = vcmp.lt.s32.totalorder %v156, 16
      %v158 = vsel %vm157, %v150, 0.0
      %v159 = vld [vmem:[#allocation7] sm:$0xff]
      %v160 = vadd.f32 %v158, 0.0
      %v161 = vadd.f32 %v159, %v160
      %162 = vst [vmem:[#allocation7] sm:$0xff] %v161
    $region33: #{tpu_custom_call.1} parent=1 // pred_fallthru
      _
    // Predicated region
    $region34: #{tpu_custom_call.1} parent=1 // pred_check
      _
    $region35: #{tpu_custom_call.1} parent=1 // pred_check_branch
      %164 = sbr.rel (0) target = $region37
    $region36: #{tpu_custom_call.1} parent=1 // pred_region
      %166 = vsyncadd [#allocation4], 0
      %s168 = sshll.u32 [#allocation7], 4
      %s169 = int_to_ptr.vmem [resolvable:$true] %s168
      %s170 = sshll.u32 %s3, 4
      %s171 = int_to_ptr.hbm [resolvable:$true] %s170
      %173 = dma.vmem_to_hbm [thread:$0]  %s169, 128, %s171, [#allocation4]
    $region37: #{tpu_custom_call.1} parent=1 // pred_fallthru
      _
    // Predicated region
    $region38: #{tpu_custom_call.1} parent=1 // pred_check
      _
    $region39: #{tpu_custom_call.1} parent=1 // pred_check_branch
      %175 = sbr.rel (0) target = $region41
    $region40: #{tpu_custom_call.1} parent=1 // pred_region
      %177 = dma.done [#allocation4], 128
    $region41: #{tpu_custom_call.1} parent=1 // pred_fallthru
      _
    %178 = vsyncpa [#allocation3], 1
    %179 = vsyncpa [#allocation6], 1
    %180 = vsyncpa [#allocation4], 1

</llo_original>
